<compile_context>
chip_gen: v7x
topology: tpu7x:2x2x1
jax: 0.10.0
libtpu: 0.0.40
codegen_flags: <defaults>
</compile_context>

<pallas_src>
import functools

import numpy as np
import jax
import jax.numpy as jnp
from jax.experimental import pallas as pl
from jax.experimental.pallas import tpu as pltpu


# ----------------------------------------------------------------------------
# in-kernel helpers
# ----------------------------------------------------------------------------
def _layernorm(v, g, b, eps=1e-5):
    v = v.astype(jnp.float32)
    mu = jnp.mean(v, axis=-1, keepdims=True)
    var = jnp.mean((v - mu) ** 2, axis=-1, keepdims=True)
    return (v - mu) * jax.lax.rsqrt(var + eps) * g + b


def _gelu_exact(x):
    # nn.GELU() default = exact (erf) form
    return 0.5 * x * (1.0 + jax.lax.erf(x * 0.7071067811865476))


# ----------------------------------------------------------------------------
# Kernel 1: LayerNorm1 + full-width K/V projection, once per token.
# ----------------------------------------------------------------------------
def _ln_kv_proj_kernel(x_ref, g1_ref, be1_ref, wk_ref, bk_ref, wv_ref, bv_ref,
                       k_out_ref, v_out_ref):
    f32, bf16 = jnp.float32, jnp.bfloat16
    xn = _layernorm(x_ref[0], g1_ref[...], be1_ref[...]).astype(bf16)
    k = jnp.dot(xn, wk_ref[...], preferred_element_type=f32) + bk_ref[...]
    v = jnp.dot(xn, wv_ref[...], preferred_element_type=f32) + bv_ref[...]
    k_out_ref[0] = k.astype(bf16)
    v_out_ref[0] = v.astype(bf16)


# ----------------------------------------------------------------------------
# Kernel 2: band-restricted neighborhood cross-attention + proj + MLP.
# One grid step = (batch element, row-aligned query tile).
# ----------------------------------------------------------------------------
def _nat_attn_mlp_kernel(
        xr_ref, qe_ref, k_ref, v_ref,            # activations / cached K,V
        qi_ref, qj_ref, kib_ref, kjb_ref,        # int32 image coordinates
        rpb_ref,                                 # (nh, (2k-1)^2) f32 in SMEM
        wq_ref, bq_ref, wp_ref, bp_ref,
        g2_ref, be2_ref, w1_ref, b1_ref, w2_ref, b2_ref,
        out_ref,
        o_acc_ref,                               # (TQ, C) f32 VMEM scratch
        *, num_heads, kernel_size, H, W, t_rows, band_rows):
    f32, bf16 = jnp.float32, jnp.bfloat16
    k = kernel_size
    half = k // 2
    span = 2 * k - 1
    T = span * span
    C = xr_ref.shape[2]
    hd = C // num_heads
    band_tok = band_rows * W

    # ---- band of keys/values for this query tile (dynamic sublane slice) ---
    tile = pl.program_id(1)
    band_row_start = jnp.clip(tile * t_rows - half, 0, H - band_rows)
    start_tok = band_row_start * W
    k_band = k_ref[0, pl.ds(start_tok, band_tok), :]     # (band_tok, C) bf16
    v_band = v_ref[0, pl.ds(start_tok, band_tok), :]     # (band_tok, C) bf16

    x_res = xr_ref[0].astype(f32)                         # (TQ, C) residual
    qe = qe_ref[0]                                        # (TQ, C) bf16

    # ---- full-width query projection (softmax scale folded into wq/bq) -----
    q_full = jnp.dot(qe, wq_ref[...], preferred_element_type=f32) + bq_ref[...]

    # ---- clamped-window geometry from tiny coordinate arrays ---------------
    iq = qi_ref[...]                                      # (TQ, 1) query row
    jq = qj_ref[...]                                      # (TQ, 1) query col
    ik = kib_ref[0]                                       # (1, band_tok) key row
    jk = kjb_ref[0]                                       # (1, band_tok) key col
    ni = jnp.clip(iq - half, 0, H - k)
    nj = jnp.clip(jq - half, 0, W - k)
    in_win = ((ik >= ni) & (ik < ni + k) &
              (jk >= nj) & (jk < nj + k))                 # (TQ, band_tok) bool
    t_idx = (ik - iq + (k - 1)) * span + (jk - jq + (k - 1))

    # ---- per-head attention; o_h written into a (TQ, C) slab ---------------
    for h in range(num_heads):
        sl = slice(h * hd, (h + 1) * hd)
        q_h = q_full[:, sl].astype(bf16)
        s = jax.lax.dot_general(q_h, k_band[:, sl],
                                (((1,), (1,)), ((), ())),
                                preferred_element_type=f32)   # (TQ, band_tok)

        # Lazy per-head relative-position bias rebuild (only one (TQ, band)
        # f32 bias live at a time).  Bias is only applied where in_win, so
        # out-of-window t_idx values never matter.
        bias_h = jnp.zeros_like(s)
        for tt in range(T):
            bias_h = bias_h + jnp.where(t_idx == tt, rpb_ref[h, tt], 0.0)

        s = jnp.where(in_win, s + bias_h, -1e30)
        s = s - jnp.max(s, axis=-1, keepdims=True)
        p = jnp.exp(s)
        p = p * pl.reciprocal(jnp.sum(p, axis=-1, keepdims=True), approx=True)

        o_acc_ref[:, sl] = jnp.dot(p.astype(bf16), v_band[:, sl],
                                   preferred_element_type=f32)

    # ---- single full-width output projection + residual --------------------
    attn = o_acc_ref[...]
    x1 = x_res + jnp.dot(attn.astype(bf16), wp_ref[...],
                         preferred_element_type=f32) + bp_ref[...]

    # ---- MLP branch ---------------------------------------------------------
    x2 = _layernorm(x1, g2_ref[...], be2_ref[...])
    hdn = jnp.dot(x2.astype(bf16), w1_ref[...],
                  preferred_element_type=f32) + b1_ref[...]
    hdn = _gelu_exact(hdn)
    m = jnp.dot(hdn.astype(bf16), w2_ref[...],
                preferred_element_type=f32) + b2_ref[...]

    out_ref[0] = (x1 + m).astype(out_ref.dtype)


# ----------------------------------------------------------------------------
# NATTEN neighborhood geometry (clamped windows) — used by the JAX reference.
# ----------------------------------------------------------------------------
def neighborhood_indices(H, W, k):
    half = k // 2
    N = H * W
    key_idx = np.zeros((N, k * k), np.int32)
    rpb_i = np.zeros((N, k * k), np.int32)
    rpb_j = np.zeros((N, k * k), np.int32)
    for i in range(H):
        ni = min(max(i - half, 0), H - k)
        for j in range(W):
            nj = min(max(j - half, 0), W - k)
            qpos = i * W + j
            for a in range(k):
                for b in range(k):
                    ki, kj = ni + a, nj + b
                    t = a * k + b
                    key_idx[qpos, t] = ki * W + kj
                    rpb_i[qpos, t] = (k - 1) + ki - i
                    rpb_j[qpos, t] = (k - 1) + kj - j
    return key_idx, rpb_i, rpb_j


# ----------------------------------------------------------------------------
# wrapper: one-time parameter transforms + two pallas_calls
# ----------------------------------------------------------------------------
def nat_cross_layer(x, q_extra, params, *, num_heads, kernel_size, q_tile=None):
    B, H, W, C = x.shape
    N = H * W
    assert C % num_heads == 0
    hd = C // num_heads
    k = kernel_size
    half = k // 2
    span = 2 * k - 1
    T = span * span
    scale = float(hd) ** -0.5
    f32, bf16 = jnp.float32, jnp.bfloat16
    VMEM_LIMIT = 48 * 1024 * 1024   # explicit budget; safe on v5e/v6e/v7x

    # ---- query tiling: whole image rows per tile ---------------------------
    if q_tile is None:
        t_rows = max(1, min(H, max(1, 256 // W)))
        while H % t_rows:
            t_rows -= 1
        q_tile = t_rows * W
    assert q_tile % W == 0, "q_tile must be a multiple of W (whole rows)"
    t_rows = q_tile // W
    assert H % t_rows == 0, "t_rows must divide H"
    n_q_tiles = H // t_rows
    band_rows = min(H, t_rows + k - 1)      # key band covering all windows
    band_tok = band_rows * W

    # ---- tiny static geometry (host-side, no O(N^2) data) ------------------
    ii, jj = np.meshgrid(np.arange(H, dtype=np.int32),
                         np.arange(W, dtype=np.int32), indexing="ij")
    qi = jnp.asarray(ii.reshape(N, 1))
    qj = jnp.asarray(jj.reshape(N, 1))

    ki_b = np.zeros((n_q_tiles, 1, band_tok), np.int32)
    kj_b = np.zeros((n_q_tiles, 1, band_tok), np.int32)
    cols = np.tile(np.arange(W, dtype=np.int32), band_rows)
    for t in range(n_q_tiles):
        rs = min(max(t * t_rows - half, 0), H - band_rows)   # == in-kernel clip
        ki_b[t, 0] = np.repeat(np.arange(rs, rs + band_rows, dtype=np.int32), W)
        kj_b[t, 0] = cols
    ki_b = jnp.asarray(ki_b)
    kj_b = jnp.asarray(kj_b)

    # ---- one-time parameter transforms --------------------------------------
    def f(p):
        return jnp.asarray(p, f32)

    rpb_s = f(params["rpb"]).reshape(num_heads, T)           # SMEM table

    wq = (f(params["wq"]) * scale).astype(bf16)              # fold softmax scale
    bq = f(params["bq"]).reshape(1, C) * scale
    wkv = f(params["wkv"])
    bkv = f(params["bkv"]).reshape(-1)
    wk = wkv[:, :C].astype(bf16)                             # split kv wrapper-side
    wv = wkv[:, C:].astype(bf16)
    bk = bkv[:C].reshape(1, C)
    bv = bkv[C:].reshape(1, C)

    wp = f(params["wp"]).astype(bf16)
    bp = f(params["bp"]).reshape(1, C)
    g1, be1 = f(params["g1"]).reshape(1, C), f(params["be1"]).reshape(1, C)
    g2, be2 = f(params["g2"]).reshape(1, C), f(params["be2"]).reshape(1, C)
    w1 = f(params["w1"]).astype(bf16)
    b1 = f(params["b1"]).reshape(1, -1)
    w2 = f(params["w2"]).astype(bf16)
    b2 = f(params["b2"]).reshape(1, C)

    xf = x.reshape(B, N, C)
    qf = q_extra.reshape(B, N, C).astype(bf16)   # only feeds a bf16 matmul

    def const_spec(arr):
        nd = arr.ndim
        return pl.BlockSpec(arr.shape, lambda b, t, _nd=nd: (0,) * _nd)

    # ---- pass 1: LN1 + K/V projection (once per token) ----------------------
    kv_tile = q_tile
    kv_weights = [g1, be1, wk, bk, wv, bv]
    k_all, v_all = pl.pallas_call(
        _ln_kv_proj_kernel,
        out_shape=(jax.ShapeDtypeStruct((B, N, C), bf16),
                   jax.ShapeDtypeStruct((B, N, C), bf16)),
        grid=(B, N // kv_tile),
        in_specs=[pl.BlockSpec((1, kv_tile, C), lambda b, t: (b, t, 0))]
                 + [const_spec(w) for w in kv_weights],
        out_specs=(pl.BlockSpec((1, kv_tile, C), lambda b, t: (b, t, 0)),
                   pl.BlockSpec((1, kv_tile, C), lambda b, t: (b, t, 0))),
        compiler_params=pltpu.CompilerParams(
            dimension_semantics=("parallel", "parallel"),
            vmem_limit_bytes=VMEM_LIMIT),
    )(xf, *kv_weights)

    # ---- pass 2: band-restricted attention + proj + residual + MLP ----------
    attn_weights = [wq, bq, wp, bp, g2, be2, w1, b1, w2, b2]
    in_specs = [
        pl.BlockSpec((1, q_tile, C), lambda b, t: (b, t, 0)),   # x residual tile
        pl.BlockSpec((1, q_tile, C), lambda b, t: (b, t, 0)),   # q_extra tile
        pl.BlockSpec((1, N, C), lambda b, t: (b, 0, 0)),        # cached K (bf16)
        pl.BlockSpec((1, N, C), lambda b, t: (b, 0, 0)),        # cached V (bf16)
        pl.BlockSpec((q_tile, 1), lambda b, t: (t, 0)),         # query rows
        pl.BlockSpec((q_tile, 1), lambda b, t: (t, 0)),         # query cols
        pl.BlockSpec((1, 1, band_tok), lambda b, t: (t, 0, 0)), # band key rows
        pl.BlockSpec((1, 1, band_tok), lambda b, t: (t, 0, 0)), # band key cols
        pl.BlockSpec(memory_space=pltpu.MemorySpace.SMEM),      # rpb table
    ] + [const_spec(w) for w in attn_weights]

    kernel = functools.partial(_nat_attn_mlp_kernel,
                               num_heads=num_heads, kernel_size=kernel_size,
                               H=H, W=W, t_rows=t_rows, band_rows=band_rows)

    out = pl.pallas_call(
        kernel,
        out_shape=jax.ShapeDtypeStruct((B, N, C), x.dtype),
        grid=(B, n_q_tiles),
        in_specs=in_specs,
        out_specs=pl.BlockSpec((1, q_tile, C), lambda b, t: (b, t, 0)),
        scratch_shapes=[pltpu.VMEM((q_tile, C), jnp.float32)],
        compiler_params=pltpu.CompilerParams(
            dimension_semantics=("parallel", "parallel"),
            vmem_limit_bytes=VMEM_LIMIT),
    )(xf, qf, k_all, v_all, qi, qj, ki_b, kj_b, rpb_s, *attn_weights)

    return out.reshape(B, H, W, C)


# ----------------------------------------------------------------------------
# pure-JAX reference (true windowed NATTEN gather) for validation
# ----------------------------------------------------------------------------
def reference_forward(x, q_extra, params, *, num_heads, kernel_size):
    B, H, W, C = x.shape
    N = H * W
    hd = C // num_heads
    scale = hd ** -0.5
    k = kernel_size
    key_idx, rpb_i, rpb_j = neighborhood_indices(H, W, k)
    key_idx = jnp.asarray(key_idx)

    def ln(v, g, b):
        mu = jnp.mean(v, -1, keepdims=True)
        var = jnp.mean((v - mu) ** 2, -1, keepdims=True)
        return (v - mu) * jax.lax.rsqrt(var + 1e-5) * g + b

    xf = x.reshape(B, N, C)
    qf = q_extra.reshape(B, N, C)

    xn = ln(xf, params["g1"][0], params["be1"][0])
    q = qf @ params["wq"] + params["bq"][0]
    kv = xn @ params["wkv"] + params["bkv"][0]
    k_ = kv[..., :C].reshape(B, N, num_heads, hd)
    v_ = kv[..., C:].reshape(B, N, num_heads, hd)
    q_ = q.reshape(B, N, num_heads, hd) * scale

    k_g = k_[:, key_idx]                                   # (B, N, kk, nh, hd)
    v_g = v_[:, key_idx]
    logits = jnp.einsum("bnhd,bnkhd->bhnk", q_, k_g)
    logits = logits + params["rpb"][:, rpb_i, rpb_j][None]  # (nh, N, kk)
    attn = jax.nn.softmax(logits, axis=-1)
    o = jnp.einsum("bhnk,bnkhd->bnhd", attn, v_g).reshape(B, N, C)
    o = o @ params["wp"] + params["bp"][0]

    x1 = xf + o
    x2 = ln(x1, params["g2"][0], params["be2"][0])
    m = jax.nn.gelu(x2 @ params["w1"] + params["b1"][0], approximate=False)
    m = m @ params["w2"] + params["b2"][0]
    return (x1 + m).reshape(B, H, W, C)


# ----------------------------------------------------------------------------
if __name__ == "__main__":
    B, H, W = 2, 8, 8
    dim, num_heads, kernel_size = 32, 4, 3
    mlp_ratio = 4.0
    hidden = int(dim * mlp_ratio)

    key = jax.random.PRNGKey(0)
    ks = jax.random.split(key, 20)

    def nrm(kk, shape, s=0.02):
        return s * jax.random.normal(kk, shape, jnp.float32)

    params = dict(
        g1=1.0 + nrm(ks[0], (1, dim)), be1=nrm(ks[1], (1, dim)),
        wq=nrm(ks[2], (dim, dim)), bq=nrm(ks[3], (1, dim)),
        wkv=nrm(ks[4], (dim, 2 * dim)), bkv=nrm(ks[5], (1, 2 * dim)),
        rpb=nrm(ks[6], (num_heads, 2 * kernel_size - 1, 2 * kernel_size - 1)),
        wp=nrm(ks[7], (dim, dim)), bp=nrm(ks[8], (1, dim)),
        g2=1.0 + nrm(ks[9], (1, dim)), be2=nrm(ks[10], (1, dim)),
        w1=nrm(ks[11], (dim, hidden)), b1=nrm(ks[12], (1, hidden)),
        w2=nrm(ks[13], (hidden, dim)), b2=nrm(ks[14], (1, dim)),
    )

    x = jax.random.normal(ks[15], (B, H, W, dim), jnp.float32)
    q_extra = jax.random.normal(ks[16], (B, H, W, dim), jnp.float32)

    # q_tile=32 (= 4 image rows) -> grid (B=2, tiles=2): exercises both grid
    # axes and the band-restricted key path (band = 6 of 8 rows).
    out = nat_cross_layer(x, q_extra, params, num_heads=num_heads,
                          kernel_size=kernel_size, q_tile=32)
    out = jax.block_until_ready(out)

    ref = reference_forward(x, q_extra, params,
                            num_heads=num_heads, kernel_size=kernel_size)
    assert out.shape == (B, H, W, dim)
    err = float(jnp.max(jnp.abs(out - ref)))
    assert err < 1e-2, f"max abs err too large: {err}"
    print("KERNEL_OK")
</pallas_src>

<mosaic_0001>
module attributes {stable_mosaic.version = 11 : i64} {
  func.func @_ln_kv_proj_kernel(%arg0: i32, %arg1: i32, %arg2: memref<1x32x32xf32, #tpu.memory_space<vmem>>, %arg3: memref<1x32xf32, #tpu.memory_space<vmem>>, %arg4: memref<1x32xf32, #tpu.memory_space<vmem>>, %arg5: memref<32x32xbf16, #tpu.memory_space<vmem>>, %arg6: memref<1x32xf32, #tpu.memory_space<vmem>>, %arg7: memref<32x32xbf16, #tpu.memory_space<vmem>>, %arg8: memref<1x32xf32, #tpu.memory_space<vmem>>, %arg9: memref<1x32x32xbf16, #tpu.memory_space<vmem>>, %arg10: memref<1x32x32xbf16, #tpu.memory_space<vmem>>) attributes {dimension_semantics = [#tpu.dimension_semantics<parallel>, #tpu.dimension_semantics<parallel>], iteration_bounds = array<i64: 2, 2>, scalar_prefetch = 0 : i64, scratch_operands = 0 : i64, tpu.core_type = #tpu.core_type<tc>, window_params = [{transform_indices = @transform_0, window_bounds = array<i64: 1, 32, 32>}, {pipeline_mode = #tpu.pipeline_mode<synchronous>, transform_indices = @transform_1, window_bounds = array<i64: 1, 32>}, {pipeline_mode = #tpu.pipeline_mode<synchronous>, transform_indices = @transform_2, window_bounds = array<i64: 1, 32>}, {pipeline_mode = #tpu.pipeline_mode<synchronous>, transform_indices = @transform_3, window_bounds = array<i64: 32, 32>}, {pipeline_mode = #tpu.pipeline_mode<synchronous>, transform_indices = @transform_4, window_bounds = array<i64: 1, 32>}, {pipeline_mode = #tpu.pipeline_mode<synchronous>, transform_indices = @transform_5, window_bounds = array<i64: 32, 32>}, {pipeline_mode = #tpu.pipeline_mode<synchronous>, transform_indices = @transform_6, window_bounds = array<i64: 1, 32>}, {transform_indices = @transform_7, window_bounds = array<i64: 1, 32, 32>}, {transform_indices = @transform_8, window_bounds = array<i64: 1, 32, 32>}]} {
    %c0 = arith.constant 0 : index
    %c0_0 = arith.constant 0 : index
    %c0_1 = arith.constant 0 : index
    %0 = vector.load %arg2[%c0, %c0_0, %c0_1] : memref<1x32x32xf32, #tpu.memory_space<vmem>>, vector<1x32x32xf32>
    %1 = vector.shape_cast %0 : vector<1x32x32xf32> to vector<32x32xf32>
    %c0_2 = arith.constant 0 : index
    %c0_3 = arith.constant 0 : index
    %2 = vector.load %arg3[%c0_2, %c0_3] : memref<1x32xf32, #tpu.memory_space<vmem>>, vector<1x32xf32>
    %c0_4 = arith.constant 0 : index
    %c0_5 = arith.constant 0 : index
    %3 = vector.load %arg4[%c0_4, %c0_5] : memref<1x32xf32, #tpu.memory_space<vmem>>, vector<1x32xf32>
    %cst = arith.constant dense<0.000000e+00> : vector<32xf32>
    %4 = vector.multi_reduction <add>, %1, %cst [1] : vector<32x32xf32> to vector<32xf32>
    %5 = vector.shape_cast %4 : vector<32xf32> to vector<32x1xf32>
    %cst_6 = arith.constant 3.200000e+01 : f32
    %6 = vector.broadcast %cst_6 : f32 to vector<32x1xf32>
    %7 = arith.divf %5, %6 : vector<32x1xf32>
    %8 = vector.broadcast %7 : vector<32x1xf32> to vector<32x32xf32>
    %9 = arith.subf %1, %8 : vector<32x32xf32>
    %10 = arith.mulf %9, %9 : vector<32x32xf32>
    %cst_7 = arith.constant dense<0.000000e+00> : vector<32xf32>
    %11 = vector.multi_reduction <add>, %10, %cst_7 [1] : vector<32x32xf32> to vector<32xf32>
    %12 = vector.shape_cast %11 : vector<32xf32> to vector<32x1xf32>
    %cst_8 = arith.constant 3.200000e+01 : f32
    %13 = vector.broadcast %cst_8 : f32 to vector<32x1xf32>
    %14 = arith.divf %12, %13 : vector<32x1xf32>
    %15 = vector.broadcast %7 : vector<32x1xf32> to vector<32x32xf32>
    %16 = arith.subf %1, %15 : vector<32x32xf32>
    %cst_9 = arith.constant 9.99999974E-6 : f32
    %17 = vector.broadcast %cst_9 : f32 to vector<32x1xf32>
    %18 = arith.addf %14, %17 : vector<32x1xf32>
    %19 = math.rsqrt %18 : vector<32x1xf32>
    %20 = vector.broadcast %19 : vector<32x1xf32> to vector<32x32xf32>
    %21 = arith.mulf %16, %20 : vector<32x32xf32>
    %22 = vector.broadcast %2 : vector<1x32xf32> to vector<32x32xf32>
    %23 = arith.mulf %21, %22 : vector<32x32xf32>
    %24 = vector.broadcast %3 : vector<1x32xf32> to vector<32x32xf32>
    %25 = arith.addf %23, %24 : vector<32x32xf32>
    %26 = arith.truncf %25 : vector<32x32xf32> to vector<32x32xbf16>
    %c0_10 = arith.constant 0 : index
    %c0_11 = arith.constant 0 : index
    %27 = vector.load %arg5[%c0_10, %c0_11] : memref<32x32xbf16, #tpu.memory_space<vmem>>, vector<32x32xbf16>
    %cst_12 = arith.constant dense<0.000000e+00> : vector<32x32xf32>
    %28 = tpu.matmul %26, %27, %cst_12 {dimension_numbers = #tpu.dot_dimension_numbers<[1], [0], [0], [1], [0, 0, 1, 1], [], []>} : vector<32x32xbf16>, vector<32x32xbf16>, vector<32x32xf32> -> vector<32x32xf32>
    %c0_13 = arith.constant 0 : index
    %c0_14 = arith.constant 0 : index
    %29 = vector.load %arg6[%c0_13, %c0_14] : memref<1x32xf32, #tpu.memory_space<vmem>>, vector<1x32xf32>
    %30 = vector.broadcast %29 : vector<1x32xf32> to vector<32x32xf32>
    %31 = arith.addf %28, %30 : vector<32x32xf32>
    %c0_15 = arith.constant 0 : index
    %c0_16 = arith.constant 0 : index
    %32 = vector.load %arg7[%c0_15, %c0_16] : memref<32x32xbf16, #tpu.memory_space<vmem>>, vector<32x32xbf16>
    %cst_17 = arith.constant dense<0.000000e+00> : vector<32x32xf32>
    %33 = tpu.matmul %26, %32, %cst_17 {dimension_numbers = #tpu.dot_dimension_numbers<[1], [0], [0], [1], [0, 0, 1, 1], [], []>} : vector<32x32xbf16>, vector<32x32xbf16>, vector<32x32xf32> -> vector<32x32xf32>
    %c0_18 = arith.constant 0 : index
    %c0_19 = arith.constant 0 : index
    %34 = vector.load %arg8[%c0_18, %c0_19] : memref<1x32xf32, #tpu.memory_space<vmem>>, vector<1x32xf32>
    %35 = vector.broadcast %34 : vector<1x32xf32> to vector<32x32xf32>
    %36 = arith.addf %33, %35 : vector<32x32xf32>
    %37 = arith.truncf %31 : vector<32x32xf32> to vector<32x32xbf16>
    %c0_20 = arith.constant 0 : index
    %c0_21 = arith.constant 0 : index
    %c0_22 = arith.constant 0 : index
    %38 = vector.load %arg9[%c0_20, %c0_21, %c0_22] : memref<1x32x32xbf16, #tpu.memory_space<vmem>>, vector<1x32x32xbf16>
    %39 = vector.shape_cast %38 : vector<1x32x32xbf16> to vector<32x32xbf16>
    %40 = vector.shape_cast %37 : vector<32x32xbf16> to vector<1x32x32xbf16>
    tpu.vector_store %arg9[%c0_20, %c0_21, %c0_22], %40 {strides = array<i32>} : memref<1x32x32xbf16, #tpu.memory_space<vmem>>, vector<1x32x32xbf16>,
    %41 = arith.truncf %36 : vector<32x32xf32> to vector<32x32xbf16>
    %c0_23 = arith.constant 0 : index
    %c0_24 = arith.constant 0 : index
    %c0_25 = arith.constant 0 : index
    %42 = vector.load %arg10[%c0_23, %c0_24, %c0_25] : memref<1x32x32xbf16, #tpu.memory_space<vmem>>, vector<1x32x32xbf16>
    %43 = vector.shape_cast %42 : vector<1x32x32xbf16> to vector<32x32xbf16>
    %44 = vector.shape_cast %41 : vector<32x32xbf16> to vector<1x32x32xbf16>
    tpu.vector_store %arg10[%c0_23, %c0_24, %c0_25], %44 {strides = array<i32>} : memref<1x32x32xbf16, #tpu.memory_space<vmem>>, vector<1x32x32xbf16>,
    return
  }
  func.func @transform_0(%arg0: i32, %arg1: i32) -> (i32, i32, i32) {
    %c0_i32 = arith.constant 0 : i32
    %c0_i32_0 = arith.constant 0 : i32
    return %arg0, %arg1, %c0_i32 : i32, i32, i32
  }
  func.func @transform_1(%arg0: i32, %arg1: i32) -> (i32, i32) {
    %c0_i32 = arith.constant 0 : i32
    %c0_i32_0 = arith.constant 0 : i32
    %c0_i32_1 = arith.constant 0 : i32
    return %c0_i32, %c0_i32_0 : i32, i32
  }
  func.func @transform_2(%arg0: i32, %arg1: i32) -> (i32, i32) {
    %c0_i32 = arith.constant 0 : i32
    %c0_i32_0 = arith.constant 0 : i32
    %c0_i32_1 = arith.constant 0 : i32
    return %c0_i32, %c0_i32_0 : i32, i32
  }
  func.func @transform_3(%arg0: i32, %arg1: i32) -> (i32, i32) {
    %c0_i32 = arith.constant 0 : i32
    %c0_i32_0 = arith.constant 0 : i32
    %c0_i32_1 = arith.constant 0 : i32
    return %c0_i32, %c0_i32_0 : i32, i32
  }
  func.func @transform_4(%arg0: i32, %arg1: i32) -> (i32, i32) {
    %c0_i32 = arith.constant 0 : i32
    %c0_i32_0 = arith.constant 0 : i32
    %c0_i32_1 = arith.constant 0 : i32
    return %c0_i32, %c0_i32_0 : i32, i32
  }
  func.func @transform_5(%arg0: i32, %arg1: i32) -> (i32, i32) {
    %c0_i32 = arith.constant 0 : i32
    %c0_i32_0 = arith.constant 0 : i32
    %c0_i32_1 = arith.constant 0 : i32
    return %c0_i32, %c0_i32_0 : i32, i32
  }
  func.func @transform_6(%arg0: i32, %arg1: i32) -> (i32, i32) {
    %c0_i32 = arith.constant 0 : i32
    %c0_i32_0 = arith.constant 0 : i32
    %c0_i32_1 = arith.constant 0 : i32
    return %c0_i32, %c0_i32_0 : i32, i32
  }
  func.func @transform_7(%arg0: i32, %arg1: i32) -> (i32, i32, i32) {
    %c0_i32 = arith.constant 0 : i32
    %c0_i32_0 = arith.constant 0 : i32
    return %arg0, %arg1, %c0_i32 : i32, i32, i32
  }
  func.func @transform_8(%arg0: i32, %arg1: i32) -> (i32, i32, i32) {
    %c0_i32 = arith.constant 0 : i32
    %c0_i32_0 = arith.constant 0 : i32
    return %arg0, %arg1, %c0_i32 : i32, i32, i32
  }
}

</mosaic_0001>

<llo_original>
// kernel: tpu_custom_call.1
$region0: #{tpu_custom_call.1}
  #allocation0 [shape = 'u32[]', space=smem, size = 0x4, offset = 0x4, fixed_abs, tag = 'smem constant byte address 0x4 - core index']
  #allocation1 [shape = 'u32[144,128]{1,0:T(1,128)}', space=vmem, size = 0x12000, scoped, tag = 'internal scratch']
  %s0 = inlined_call_operand.vmem [shape: f32[2,64,32], index: 0, kind: input, shape index: {}]
  %s1 = inlined_call_operand.vmem [shape: f32[1,32], index: 1, kind: input, shape index: {}]
  %s2 = inlined_call_operand.vmem [shape: f32[1,32], index: 2, kind: input, shape index: {}]
  %s3 = inlined_call_operand.vmem [shape: bf16[32,32], index: 3, kind: input, shape index: {}]
  %s4 = inlined_call_operand.vmem [shape: f32[1,32], index: 4, kind: input, shape index: {}]
  %s5 = inlined_call_operand.vmem [shape: bf16[32,32], index: 5, kind: input, shape index: {}]
  %s6 = inlined_call_operand.vmem [shape: f32[1,32], index: 6, kind: input, shape index: {}]
  %s7 = inlined_call_operand.vmem [shape: bf16[2,64,32], index: 7, kind: output, shape index: {0}]
  %s8 = inlined_call_operand.vmem [shape: bf16[2,64,32], index: 8, kind: output, shape index: {1}]
  %9 = xla_tuple %s7, %s8
  %s10 = sld [smem:[#allocation0]]
  $region69: #{tpu_custom_call.1} parent=0
    _
  %s12 = ssub.s32 1, %s10
  %s13 = scalar_select 0, %s12, %s10
  loop: start=0, step=1, limit=6
  $region2: #{tpu_custom_call.1} parent=0 // loop_pre_header
    _
  $region3: #{tpu_custom_call.1} parent=0 // loop_header
    %s15 = sphi 0, %s19
    %p16 = scmp.ge.s32.totalorder %s15, 6
    %s22 = sphi 0, %s34
    %s23 = sphi 0, %s30
    %s24 = sphi 0, %s22
    %s25 = sphi 0, %s23
    %s26 = sphi 0, %s24
    %s27 = sphi 0, %s25
    %s39 = sphi 0, %s41
    %s42 = sphi 0, %s39
    %s43 = sphi 0, %s42
    %s59 = sphi 0, %s43
    %s63 = sphi 0, %s63
    %s65 = sphi 0, %s63
    %s66 = sphi 0, %s65
    %s80 = sphi 0, %s66
    %s84 = sphi 0, %s84
    %s86 = sphi 0, %s84
    %s87 = sphi 0, %s86
    %s101 = sphi 0, %s87
    %s105 = sphi 0, %s105
    %s107 = sphi 0, %s105
    %s108 = sphi 0, %s107
    %s122 = sphi 0, %s108
    %s126 = sphi 0, %s126
    %s128 = sphi 0, %s126
    %s129 = sphi 0, %s128
    %s143 = sphi 0, %s129
    %s147 = sphi 0, %s147
    %s149 = sphi 0, %s147
    %s150 = sphi 0, %s149
    %s164 = sphi 0, %s150
    %s168 = sphi 0, %s168
    %s170 = sphi 0, %s168
    %s171 = sphi 0, %s170
    %s185 = sphi 0, %s171
    %s193 = sphi 0, %s195
    %s196 = sphi 0, %s193
    %s197 = sphi 0, %s196
    %s213 = sphi 0, %s197
    %s221 = sphi 0, %s223
    %s224 = sphi 0, %s221
    %s225 = sphi 0, %s224
    %s241 = sphi 0, %s225
  $region4: #{tpu_custom_call.1} parent=0 // loop_header_branch
    %18 = sbr.rel (%p16) target = $region8
  $region5: #{tpu_custom_call.1} parent=0 // loop_body
    %s20 = ssub.s32 %s15, 1
    %s21 = ssub.s32 %s15, 2
    %s28 = sadd.s32 1, %s23
    %p29 = scmp.ge.s32.totalorder %s28, 2
    %s30 = scalar_select %p29, 0, %s28
    %s31 = sadd.s32 1, %s22
    %s32 = scalar_select %p29, %s31, %s22
    %p33 = scmp.ge.s32.totalorder %s32, 2
    %s34 = scalar_select %p33, 0, %s32
    %s35 = ssub.s32 %s22, %s34
    %s36 = ssub.s32 %s23, %s30
    %s37 = sor.u32 %s35, %s36
    %p38 = scmp.eq.s32.totalorder %s37, 0
    %s40 = sadd.s32 %s39, 1
    %s41 = scalar_select %p38, %s39, %s40
    %p44 = pneg %p38
    %p45 = scmp.eq.s32.totalorder %s15, 3
    %p46 = por %p44, %p45
    %p47 = scmp.ne.s32.totalorder %s39, %s42
    %p48 = scmp.eq.s32.totalorder %s15, 0
    %p49 = por %p47, %p48
    %p50 = scmp.ne.s32.totalorder %s39, %s42
    %p51 = scmp.eq.s32.totalorder %s20, 3
    %p52 = por %p50, %p51
    %p53 = scmp.ne.s32.totalorder %s42, %s43
    %p54 = scmp.eq.s32.totalorder %s20, 0
    %p55 = por %p53, %p54
    %p56 = scmp.ne.s32.totalorder %s42, %s43
    %p57 = scmp.eq.s32.totalorder %s21, 3
    %p58 = por %p56, %p57
    %p60 = scmp.ne.s32.totalorder %s43, %s59
    %p61 = scmp.eq.s32.totalorder %s21, 0
    %p62 = por %p60, %p61
    %s64 = sadd.s32 %s63, 1
    %p67 = scmp.eq.s32.totalorder %s15, 3
    %p68 = scmp.ne.s32.totalorder %s63, %s65
    %p69 = scmp.eq.s32.totalorder %s15, 0
    %p70 = por %p68, %p69
    %p71 = scmp.ne.s32.totalorder %s63, %s65
    %p72 = scmp.eq.s32.totalorder %s20, 3
    %p73 = por %p71, %p72
    %p74 = scmp.ne.s32.totalorder %s65, %s66
    %p75 = scmp.eq.s32.totalorder %s20, 0
    %p76 = por %p74, %p75
    %p77 = scmp.ne.s32.totalorder %s65, %s66
    %p78 = scmp.eq.s32.totalorder %s21, 3
    %p79 = por %p77, %p78
    %p81 = scmp.ne.s32.totalorder %s66, %s80
    %p82 = scmp.eq.s32.totalorder %s21, 0
    %p83 = por %p81, %p82
    %s85 = sadd.s32 %s84, 1
    %p88 = scmp.eq.s32.totalorder %s15, 3
    %p89 = scmp.ne.s32.totalorder %s84, %s86
    %p90 = scmp.eq.s32.totalorder %s15, 0
    %p91 = por %p89, %p90
    %p92 = scmp.ne.s32.totalorder %s84, %s86
    %p93 = scmp.eq.s32.totalorder %s20, 3
    %p94 = por %p92, %p93
    %p95 = scmp.ne.s32.totalorder %s86, %s87
    %p96 = scmp.eq.s32.totalorder %s20, 0
    %p97 = por %p95, %p96
    %p98 = scmp.ne.s32.totalorder %s86, %s87
    %p99 = scmp.eq.s32.totalorder %s21, 3
    %p100 = por %p98, %p99
    %p102 = scmp.ne.s32.totalorder %s87, %s101
    %p103 = scmp.eq.s32.totalorder %s21, 0
    %p104 = por %p102, %p103
    %s106 = sadd.s32 %s105, 1
    %p109 = scmp.eq.s32.totalorder %s15, 3
    %p110 = scmp.ne.s32.totalorder %s105, %s107
    %p111 = scmp.eq.s32.totalorder %s15, 0
    %p112 = por %p110, %p111
    %p113 = scmp.ne.s32.totalorder %s105, %s107
    %p114 = scmp.eq.s32.totalorder %s20, 3
    %p115 = por %p113, %p114
    %p116 = scmp.ne.s32.totalorder %s107, %s108
    %p117 = scmp.eq.s32.totalorder %s20, 0
    %p118 = por %p116, %p117
    %p119 = scmp.ne.s32.totalorder %s107, %s108
    %p120 = scmp.eq.s32.totalorder %s21, 3
    %p121 = por %p119, %p120
    %p123 = scmp.ne.s32.totalorder %s108, %s122
    %p124 = scmp.eq.s32.totalorder %s21, 0
    %p125 = por %p123, %p124
    %s127 = sadd.s32 %s126, 1
    %p130 = scmp.eq.s32.totalorder %s15, 3
    %p131 = scmp.ne.s32.totalorder %s126, %s128
    %p132 = scmp.eq.s32.totalorder %s15, 0
    %p133 = por %p131, %p132
    %p134 = scmp.ne.s32.totalorder %s126, %s128
    %p135 = scmp.eq.s32.totalorder %s20, 3
    %p136 = por %p134, %p135
    %p137 = scmp.ne.s32.totalorder %s128, %s129
    %p138 = scmp.eq.s32.totalorder %s20, 0
    %p139 = por %p137, %p138
    %p140 = scmp.ne.s32.totalorder %s128, %s129
    %p141 = scmp.eq.s32.totalorder %s21, 3
    %p142 = por %p140, %p141
    %p144 = scmp.ne.s32.totalorder %s129, %s143
    %p145 = scmp.eq.s32.totalorder %s21, 0
    %p146 = por %p144, %p145
    %s148 = sadd.s32 %s147, 1
    %p151 = scmp.eq.s32.totalorder %s15, 3
    %p152 = scmp.ne.s32.totalorder %s147, %s149
    %p153 = scmp.eq.s32.totalorder %s15, 0
    %p154 = por %p152, %p153
    %p155 = scmp.ne.s32.totalorder %s147, %s149
    %p156 = scmp.eq.s32.totalorder %s20, 3
    %p157 = por %p155, %p156
    %p158 = scmp.ne.s32.totalorder %s149, %s150
    %p159 = scmp.eq.s32.totalorder %s20, 0
    %p160 = por %p158, %p159
    %p161 = scmp.ne.s32.totalorder %s149, %s150
    %p162 = scmp.eq.s32.totalorder %s21, 3
    %p163 = por %p161, %p162
    %p165 = scmp.ne.s32.totalorder %s150, %s164
    %p166 = scmp.eq.s32.totalorder %s21, 0
    %p167 = por %p165, %p166
    %s169 = sadd.s32 %s168, 1
    %p172 = scmp.eq.s32.totalorder %s15, 3
    %p173 = scmp.ne.s32.totalorder %s168, %s170
    %p174 = scmp.eq.s32.totalorder %s15, 0
    %p175 = por %p173, %p174
    %p176 = scmp.ne.s32.totalorder %s168, %s170
    %p177 = scmp.eq.s32.totalorder %s20, 3
    %p178 = por %p176, %p177
    %p179 = scmp.ne.s32.totalorder %s170, %s171
    %p180 = scmp.eq.s32.totalorder %s20, 0
    %p181 = por %p179, %p180
    %p182 = scmp.ne.s32.totalorder %s170, %s171
    %p183 = scmp.eq.s32.totalorder %s21, 3
    %p184 = por %p182, %p183
    %p186 = scmp.ne.s32.totalorder %s171, %s185
    %p187 = scmp.eq.s32.totalorder %s21, 0
    %p188 = por %p186, %p187
    %s189 = ssub.s32 %s22, %s34
    %s190 = ssub.s32 %s23, %s30
    %s191 = sor.u32 %s189, %s190
    %p192 = scmp.eq.s32.totalorder %s191, 0
    %s194 = sadd.s32 %s193, 1
    %s195 = scalar_select %p192, %s193, %s194
    %p198 = pneg %p192
    %p199 = scmp.eq.s32.totalorder %s15, 3
    %p200 = por %p198, %p199
    %p201 = scmp.ne.s32.totalorder %s193, %s196
    %p202 = scmp.eq.s32.totalorder %s15, 0
    %p203 = por %p201, %p202
    %p204 = scmp.ne.s32.totalorder %s193, %s196
    %p205 = scmp.eq.s32.totalorder %s20, 3
    %p206 = por %p204, %p205
    %p207 = scmp.ne.s32.totalorder %s196, %s197
    %p208 = scmp.eq.s32.totalorder %s20, 0
    %p209 = por %p207, %p208
    %p210 = scmp.ne.s32.totalorder %s196, %s197
    %p211 = scmp.eq.s32.totalorder %s21, 3
    %p212 = por %p210, %p211
    %p214 = scmp.ne.s32.totalorder %s197, %s213
    %p215 = scmp.eq.s32.totalorder %s21, 0
    %p216 = por %p214, %p215
    %s217 = ssub.s32 %s22, %s34
    %s218 = ssub.s32 %s23, %s30
    %s219 = sor.u32 %s217, %s218
    %p220 = scmp.eq.s32.totalorder %s219, 0
    %s222 = sadd.s32 %s221, 1
    %s223 = scalar_select %p220, %s221, %s222
    %p226 = pneg %p220
    %p227 = scmp.eq.s32.totalorder %s15, 3
    %p228 = por %p226, %p227
    %p229 = scmp.ne.s32.totalorder %s221, %s224
    %p230 = scmp.eq.s32.totalorder %s15, 0
    %p231 = por %p229, %p230
    %p232 = scmp.ne.s32.totalorder %s221, %s224
    %p233 = scmp.eq.s32.totalorder %s20, 3
    %p234 = por %p232, %p233
    %p235 = scmp.ne.s32.totalorder %s224, %s225
    %p236 = scmp.eq.s32.totalorder %s20, 0
    %p237 = por %p235, %p236
    %p238 = scmp.ne.s32.totalorder %s224, %s225
    %p239 = scmp.eq.s32.totalorder %s21, 3
    %p240 = por %p238, %p239
    %p242 = scmp.ne.s32.totalorder %s225, %s241
    %p243 = scmp.eq.s32.totalorder %s21, 0
    %p244 = por %p242, %p243
    %p245 = scmp.le.s32.totalorder 1, %s15
    %p246 = scmp.lt.s32.totalorder %s15, 5
    %p247 = pnand %p245, %p246
    %p248 = pneg %p247
    // Predicated region
    $region9: #{tpu_custom_call.1} parent=5 // pred_check
      _
    $region10: #{tpu_custom_call.1} parent=5 // pred_check_branch
      %250 = sbr.rel (%p247) target = $region12
    $region11: #{tpu_custom_call.1} parent=5 // pred_region
      %s251 = ssub.s32 %s15, 1
      // Predicated region
      $region13: #{tpu_custom_call.1} parent=11 // pred_check
        %p252 = pneg %p76
      $region14: #{tpu_custom_call.1} parent=11 // pred_check_branch
        %254 = sbr.rel (%p252) target = $region16
      $region15: #{tpu_custom_call.1} parent=11 // pred_region
        _
      $region16: #{tpu_custom_call.1} parent=11 // pred_fallthru
        _
      // Predicated region
      $region17: #{tpu_custom_call.1} parent=11 // pred_check
        %p255 = pneg %p97
      $region18: #{tpu_custom_call.1} parent=11 // pred_check_branch
        %257 = sbr.rel (%p255) target = $region20
      $region19: #{tpu_custom_call.1} parent=11 // pred_region
        _
      $region20: #{tpu_custom_call.1} parent=11 // pred_fallthru
        _
      // Predicated region
      $region21: #{tpu_custom_call.1} parent=11 // pred_check
        %p258 = pneg %p118
      $region22: #{tpu_custom_call.1} parent=11 // pred_check_branch
        %260 = sbr.rel (%p258) target = $region24
      $region23: #{tpu_custom_call.1} parent=11 // pred_region
        _
      $region24: #{tpu_custom_call.1} parent=11 // pred_fallthru
        _
      // Predicated region
      $region25: #{tpu_custom_call.1} parent=11 // pred_check
        %p261 = pneg %p139
      $region26: #{tpu_custom_call.1} parent=11 // pred_check_branch
        %263 = sbr.rel (%p261) target = $region28
      $region27: #{tpu_custom_call.1} parent=11 // pred_region
        _
      $region28: #{tpu_custom_call.1} parent=11 // pred_fallthru
        _
      // Predicated region
      $region29: #{tpu_custom_call.1} parent=11 // pred_check
        %p264 = pneg %p160
      $region30: #{tpu_custom_call.1} parent=11 // pred_check_branch
        %266 = sbr.rel (%p264) target = $region32
      $region31: #{tpu_custom_call.1} parent=11 // pred_region
        _
      $region32: #{tpu_custom_call.1} parent=11 // pred_fallthru
        _
      // Predicated region
      $region33: #{tpu_custom_call.1} parent=11 // pred_check
        %p267 = pneg %p181
      $region34: #{tpu_custom_call.1} parent=11 // pred_check_branch
        %269 = sbr.rel (%p267) target = $region36
      $region35: #{tpu_custom_call.1} parent=11 // pred_region
        _
      $region36: #{tpu_custom_call.1} parent=11 // pred_fallthru
        _
    $region12: #{tpu_custom_call.1} parent=5 // pred_fallthru
      _
    %p270 = scmp.lt.s32.totalorder %s15, 4
    // Predicated region
    $region37: #{tpu_custom_call.1} parent=5 // pred_check
      %p271 = pneg %p270
    $region38: #{tpu_custom_call.1} parent=5 // pred_check_branch
      %273 = sbr.rel (%p271) target = $region40
    $region39: #{tpu_custom_call.1} parent=5 // pred_region
      // Predicated region
      $region41: #{tpu_custom_call.1} parent=39 // pred_check
        %p274 = pneg %p49
      $region42: #{tpu_custom_call.1} parent=39 // pred_check_branch
        %276 = sbr.rel (%p274) target = $region44
      $region43: #{tpu_custom_call.1} parent=39 // pred_region
        %s277 = smul.u32 4, %s23
        %p278 = scmp.lt.s32.totalorder %s22, 1
        %s279 = scalar_select %p278, %s22, 1
        %p280 = scmp.lt.s32.totalorder %s277, 7
        %s281 = scalar_select %p280, %s277, 7
        %s282 = smul.addr %s279, 8
        %s283 = sadd.s32 %s281, %s282
        %s284 = smul.addr %s283, 8
        %s285 = scalar_lea.vmem %s0, %s284
        %s286 = smul.u32 4, %s23
      $region44: #{tpu_custom_call.1} parent=39 // pred_fallthru
        _
    $region40: #{tpu_custom_call.1} parent=5 // pred_fallthru
      _
    %p287 = scmp.le.s32.totalorder 1, %s15
    %p288 = scmp.lt.s32.totalorder %s15, 5
    %p289 = pnand %p287, %p288
    %p290 = pneg %p289
    // Predicated region
    $region45: #{tpu_custom_call.1} parent=5 // pred_check
      _
    $region46: #{tpu_custom_call.1} parent=5 // pred_check_branch
      %292 = sbr.rel (%p289) target = $region48
    $region47: #{tpu_custom_call.1} parent=5 // pred_region
      %s293 = ssub.s32 %s15, 1
      %s294 = smul.u32 4, %s25
      %p295 = scmp.lt.s32.totalorder %s24, 1
      %s296 = scalar_select %p295, %s24, 1
      %p297 = scmp.lt.s32.totalorder %s294, 7
      %s298 = scalar_select %p297, %s294, 7
      %s299 = smul.addr %s296, 8
      %s300 = sadd.s32 %s298, %s299
      %s301 = smul.addr %s300, 8
      %s302 = scalar_lea.vmem %s0, %s301
      %p303 = pneg %p55
      %p304 = pneg %p52
      %p305 = pneg %p76
      %p306 = pneg %p73
      %p307 = pneg %p97
      %p308 = pneg %p94
      %p309 = pneg %p118
      %p310 = pneg %p115
      %p311 = pneg %p139
      %p312 = pneg %p136
      %p313 = pneg %p160
      %p314 = pneg %p157
      %p315 = pneg %p181
      %p316 = pneg %p178
      %p317 = pneg %p209
      %p318 = pneg %p206
      %s319 = smul.u32 4, %s25
      %p320 = scmp.lt.s32.totalorder %s24, 1
      %s321 = scalar_select %p320, %s24, 1
      %p322 = scmp.lt.s32.totalorder %s319, 7
      %s323 = scalar_select %p322, %s319, 7
      %s324 = smul.addr %s321, 8
      %s325 = sadd.s32 %s323, %s324
      %s326 = smul.addr %s325, 4
      %s327 = scalar_lea.vmem %s7, %s326
      %p328 = pneg %p237
      %p329 = pneg %p234
      %s330 = smul.u32 4, %s25
      %p331 = scmp.lt.s32.totalorder %s24, 1
      %s332 = scalar_select %p331, %s24, 1
      %p333 = scmp.lt.s32.totalorder %s330, 7
      %s334 = scalar_select %p333, %s330, 7
      %s335 = smul.addr %s332, 8
      %s336 = sadd.s32 %s334, %s335
      %s337 = smul.addr %s336, 4
      %s338 = scalar_lea.vmem %s8, %s337
      %s339 = smul.u32 4, %s25
      %p340 = scmp.lt.s32.totalorder %s24, 1
      %s341 = scalar_select %p340, %s24, 1
      %p342 = scmp.lt.s32.totalorder %s339, 7
      %s343 = scalar_select %p342, %s339, 7
      %s344 = smul.addr %s341, 8
      %s345 = sadd.s32 %s343, %s344
      %s346 = smul.addr %s345, 8
      %s347 = scalar_lea.vmem %s0, %s346
      %s348 = smul.u32 4, %s25
      %s349 = smul.u32 4, %s25
      %p350 = scmp.lt.s32.totalorder %s24, 1
      %s351 = scalar_select %p350, %s24, 1
      %p352 = scmp.lt.s32.totalorder %s349, 7
      %s353 = scalar_select %p352, %s349, 7
      %s354 = smul.addr %s351, 8
      %s355 = sadd.s32 %s353, %s354
      %s356 = smul.addr %s355, 4
      %s357 = scalar_lea.vmem %s7, %s356
      %s358 = smul.u32 4, %s25
      %s359 = smul.u32 4, %s25
      %p360 = scmp.lt.s32.totalorder %s24, 1
      %s361 = scalar_select %p360, %s24, 1
      %p362 = scmp.lt.s32.totalorder %s359, 7
      %s363 = scalar_select %p362, %s359, 7
      %s364 = smul.addr %s361, 8
      %s365 = sadd.s32 %s363, %s364
      %s366 = smul.addr %s365, 4
      %s367 = scalar_lea.vmem %s8, %s366
      %s368 = smul.u32 4, %s25
      %v370 = vld [vmem:[%s347] sm:$0xff]
      %v371 = vld [vmem:[%s347 + $0x8] sm:$0xff]
      %v372 = vld [vmem:[%s347 + $0x10] sm:$0xff]
      %v373 = vld [vmem:[%s347 + $0x18] sm:$0xff]
      %v374 = vld [vmem:[%s1] sm:$0x1]
      %v375 = vld [vmem:[%s2] sm:$0x1]
      %vm376 = vcmask 261120
      %v377 = vsel %vm376, %v370, 0.0
      %378 = vadd.xlane.f32.xlu0 %v377
      %v379 = vpop.xlane.xlu0 %378
      %v380 = vsel %vm376, %v371, 0.0
      %381 = vadd.xlane.f32.xlu0 %v380
      %v382 = vpop.xlane.xlu0 %381
      %v383 = vsel %vm376, %v372, 0.0
      %384 = vadd.xlane.f32.xlu0 %v383
      %v385 = vpop.xlane.xlu0 %384
      %v386 = vsel %vm376, %v373, 0.0
      %387 = vadd.xlane.f32.xlu0 %v386
      %v388 = vpop.xlane.xlu0 %387
      %v389 = vrcp.pop 32.0
      %v390 = vmul.f32 %v379, %v389
      %v391 = vmul.f32 %v382, %v389
      %v392 = vmul.f32 %v385, %v389
      %v393 = vmul.f32 %v388, %v389
      %v394 = vsub.f32 %v370, %v390
      %v395 = vsub.f32 %v371, %v391
      %v396 = vsub.f32 %v372, %v392
      %v397 = vsub.f32 %v373, %v393
      %v398 = vmul.f32 %v394, %v394
      %v399 = vmul.f32 %v395, %v395
      %v400 = vmul.f32 %v396, %v396
      %v401 = vmul.f32 %v397, %v397
      %v402 = vsel %vm376, %v398, 0.0
      %403 = vadd.xlane.f32.xlu0 %v402
      %v404 = vpop.xlane.xlu0 %403
      %v405 = vsel %vm376, %v399, 0.0
      %406 = vadd.xlane.f32.xlu0 %v405
      %v407 = vpop.xlane.xlu0 %406
      %v408 = vsel %vm376, %v400, 0.0
      %409 = vadd.xlane.f32.xlu0 %v408
      %v410 = vpop.xlane.xlu0 %409
      %v411 = vsel %vm376, %v401, 0.0
      %412 = vadd.xlane.f32.xlu0 %v411
      %v413 = vpop.xlane.xlu0 %412
      %v414 = vmul.f32 %v404, %v389
      %v415 = vmul.f32 %v407, %v389
      %v416 = vmul.f32 %v410, %v389
      %v417 = vmul.f32 %v413, %v389
      %v418 = vadd.f32 %v414, 1e-05
      %v419 = vadd.f32 %v415, 1e-05
      %v420 = vadd.f32 %v416, 1e-05
      %v421 = vadd.f32 %v417, 1e-05
      %v422 = vrsqrt.pop %v418
      %v423 = vrsqrt.pop %v419
      %v424 = vrsqrt.pop %v420
      %v425 = vrsqrt.pop %v421
      %v426 = vmul.f32 %v394, %v422
      %v427 = vmul.f32 %v395, %v423
      %v428 = vmul.f32 %v396, %v424
      %v429 = vmul.f32 %v397, %v425
      %v431 = vlaneseq
      %v432 = vshrl.u32 %v431, 7
      %v433 = vsub.s32 0, %v432
      %v434 = vrot.slane %v374, %v433
      %v436 = vmul.f32 %v426, %v434
      %v437 = vmul.f32 %v427, %v434
      %v438 = vmul.f32 %v428, %v434
      %v439 = vmul.f32 %v429, %v434
      %v441 = vlaneseq
      %v442 = vshrl.u32 %v441, 7
      %v443 = vsub.s32 0, %v442
      %v444 = vrot.slane %v375, %v443
      %v446 = vadd.f32 %v436, %v444
      %v447 = vadd.f32 %v437, %v444
      %v448 = vadd.f32 %v438, %v444
      %v449 = vadd.f32 %v439, %v444
      %v450 = vpack.c.bf16 %v447, %v446
      %v451 = vpack.c.bf16 %v449, %v448
      %v452 = vld [vmem:[%s3] sm:$0xf]
      %v453 = vld [vmem:[%s3 + $0x4] sm:$0xf]
      %v454 = vld [vmem:[%s3 + $0x8] sm:$0xf]
      %v455 = vld [vmem:[%s3 + $0xc] sm:$0xf]
      %v456 = vld [vmem:[%s4] sm:$0x1]
      %v458 = vlaneseq
      %v459 = vshrl.u32 %v458, 7
      %v460 = vsub.s32 0, %v459
      %v461 = vrot.slane %v456, %v460
      %v467 = vunpack.c.l.b16 %v452
      %v468 = vunpack.c.l.b16 %v453
      %v469 = vunpack.c.l.b16 %v454
      %v470 = vunpack.c.l.b16 %v455
      %v471 = vpack.c.b16 %v468, %v467
      %v472 = vpack.c.b16 %v470, %v469
      %v476 = vsel %vm376, %v450, 0
      %v479 = vsel %vm376, %v451, 0
      %481 = vmatprep.subr.bf16.mxu0 0
      %482 = vmatpush1.bf16.msra.mxu0 %v471
      %483 = vmatprep.subr.bf16.mxu0 0
      %484 = vmatpush1.bf16.msra.mxu0 %v472
      %485 = vmatprep.subr.bf16.mxu0 0
      %486 = vmatpush1.bf16.msra.mxu0 0
      %487 = vmatprep.subr.bf16.mxu0 0
      %488 = vmatpush1.bf16.msra.mxu0 0
      %489 = vmatprep.subr.bf16.mxu0 0
      %490 = vmatpush1.bf16.msra.mxu0 0
      %491 = vmatprep.subr.bf16.mxu0 0
      %492 = vmatpush1.bf16.msra.mxu0 0
      %493 = vmatprep.subr.bf16.mxu0 0
      %494 = vmatpush1.bf16.msra.mxu0 0
      %495 = vmatprep.subr.bf16.mxu0 0
      %496 = vmatpush1.bf16.msra.mxu0 0
      %497 = vmatprep.subr.bf16.mxu0 0
      %498 = vmatpush1.bf16.msra.mxu0 0
      %499 = vmatprep.subr.bf16.mxu0 0
      %500 = vmatpush1.bf16.msra.mxu0 0
      %501 = vmatprep.subr.bf16.mxu0 0
      %502 = vmatpush1.bf16.msra.mxu0 0
      %503 = vmatprep.subr.bf16.mxu0 0
      %504 = vmatpush1.bf16.msra.mxu0 0
      %505 = vmatprep.subr.bf16.mxu0 0
      %506 = vmatpush1.bf16.msra.mxu0 0
      %507 = vmatprep.subr.bf16.mxu0 0
      %508 = vmatpush1.bf16.msra.mxu0 0
      %509 = vmatprep.subr.bf16.mxu0 0
      %510 = vmatpush1.bf16.msra.mxu0 0
      %511 = vmatprep.subr.bf16.mxu0 0
      %512 = vmatpush1.bf16.msra.mxu0 0
      %513 = vmatprep.mubr.bf16.mxu0 0
      %514 = vmatmul.mubr.bf16.gmra.mrb[0].mxu0 %v476
      %v515 = vpop.f32.mrb[0].mxu0
      %v516 = vadd.f32 %v461, %v515
      %v517 = vpop.f32.mrb[0].mxu0
      %v518 = vpop.f32.mrb[0].mxu0
      %v519 = vadd.f32 %v461, %v518
      %v520 = vpop.f32.mrb[0].mxu0
      %521 = vmatprep.mubr.bf16.mxu0 0
      %522 = vmatmul.mubr.bf16.gmra.mrb[0].mxu0 %v479
      %v523 = vpop.f32.mrb[0].mxu0
      %v524 = vadd.f32 %v461, %v523
      %v525 = vpop.f32.mrb[0].mxu0
      %v526 = vpop.f32.mrb[0].mxu0
      %v527 = vadd.f32 %v461, %v526
      %v528 = vpop.f32.mrb[0].mxu0
      %529 = vdwg.mxu0
      %v530 = vld [vmem:[%s5] sm:$0xf]
      %v531 = vld [vmem:[%s5 + $0x4] sm:$0xf]
      %v532 = vld [vmem:[%s5 + $0x8] sm:$0xf]
      %v533 = vld [vmem:[%s5 + $0xc] sm:$0xf]
      %v534 = vld [vmem:[%s6] sm:$0x1]
      %v536 = vlaneseq
      %v537 = vshrl.u32 %v536, 7
      %v538 = vsub.s32 0, %v537
      %v539 = vrot.slane %v534, %v538
      %v545 = vunpack.c.l.b16 %v530
      %v546 = vunpack.c.l.b16 %v531
      %v547 = vunpack.c.l.b16 %v532
      %v548 = vunpack.c.l.b16 %v533
      %v549 = vpack.c.b16 %v546, %v545
      %v550 = vpack.c.b16 %v548, %v547
      %553 = vmatprep.subr.bf16.mxu0 0
      %554 = vmatpush1.bf16.msra.mxu0 %v549
      %555 = vmatprep.subr.bf16.mxu0 0
      %556 = vmatpush1.bf16.msra.mxu0 %v550
      %557 = vmatprep.subr.bf16.mxu0 0
      %558 = vmatpush1.bf16.msra.mxu0 0
      %559 = vmatprep.subr.bf16.mxu0 0
      %560 = vmatpush1.bf16.msra.mxu0 0
      %561 = vmatprep.subr.bf16.mxu0 0
      %562 = vmatpush1.bf16.msra.mxu0 0
      %563 = vmatprep.subr.bf16.mxu0 0
      %564 = vmatpush1.bf16.msra.mxu0 0
      %565 = vmatprep.subr.bf16.mxu0 0
      %566 = vmatpush1.bf16.msra.mxu0 0
      %567 = vmatprep.subr.bf16.mxu0 0
      %568 = vmatpush1.bf16.msra.mxu0 0
      %569 = vmatprep.subr.bf16.mxu0 0
      %570 = vmatpush1.bf16.msra.mxu0 0
      %571 = vmatprep.subr.bf16.mxu0 0
      %572 = vmatpush1.bf16.msra.mxu0 0
      %573 = vmatprep.subr.bf16.mxu0 0
      %574 = vmatpush1.bf16.msra.mxu0 0
      %575 = vmatprep.subr.bf16.mxu0 0
      %576 = vmatpush1.bf16.msra.mxu0 0
      %577 = vmatprep.subr.bf16.mxu0 0
      %578 = vmatpush1.bf16.msra.mxu0 0
      %579 = vmatprep.subr.bf16.mxu0 0
      %580 = vmatpush1.bf16.msra.mxu0 0
      %581 = vmatprep.subr.bf16.mxu0 0
      %582 = vmatpush1.bf16.msra.mxu0 0
      %583 = vmatprep.subr.bf16.mxu0 0
      %584 = vmatpush1.bf16.msra.mxu0 0
      %585 = vmatprep.mubr.bf16.mxu0 0
      %586 = vmatmul.mubr.bf16.gmra.mrb[0].mxu0 %v476
      %v587 = vpop.f32.mrb[0].mxu0
      %v588 = vadd.f32 %v539, %v587
      %v589 = vpop.f32.mrb[0].mxu0
      %v590 = vpop.f32.mrb[0].mxu0
      %v591 = vadd.f32 %v539, %v590
      %v592 = vpop.f32.mrb[0].mxu0
      %593 = vmatprep.mubr.bf16.mxu0 0
      %594 = vmatmul.mubr.bf16.gmra.mrb[0].mxu0 %v479
      %v595 = vpop.f32.mrb[0].mxu0
      %v596 = vadd.f32 %v539, %v595
      %v597 = vpop.f32.mrb[0].mxu0
      %v598 = vpop.f32.mrb[0].mxu0
      %v599 = vadd.f32 %v539, %v598
      %v600 = vpop.f32.mrb[0].mxu0
      %601 = vdwg.mxu0
      %v602 = vpack.c.bf16 %v519, %v516
      %v603 = vpack.c.bf16 %v527, %v524
      %v606 = vunpack.c.l.b16 %v602
      %v607 = vunpack.c.h.b16 %v602
      %v608 = vunpack.c.l.b16 %v603
      %v609 = vunpack.c.h.b16 %v603
      %v610 = vpack.c.b16 %v606, %v606
      %v611 = vpack.c.b16 %v607, %v607
      %v612 = vpack.c.b16 %v608, %v608
      %v613 = vpack.c.b16 %v609, %v609
      %vm618 = vcmask 257024
      %619 = vst.msk [vmem:[%s357] sm:$0xf] %vm618, %v610
      %620 = vst.msk [vmem:[%s357 + $0x4] sm:$0xf] %vm618, %v611
      %621 = vst.msk [vmem:[%s357 + $0x8] sm:$0xf] %vm618, %v612
      %622 = vst.msk [vmem:[%s357 + $0xc] sm:$0xf] %vm618, %v613
      %v623 = vpack.c.bf16 %v591, %v588
      %v624 = vpack.c.bf16 %v599, %v596
      %v627 = vunpack.c.l.b16 %v623
      %v628 = vunpack.c.h.b16 %v623
      %v629 = vunpack.c.l.b16 %v624
      %v630 = vunpack.c.h.b16 %v624
      %v631 = vpack.c.b16 %v627, %v627
      %v632 = vpack.c.b16 %v628, %v628
      %v633 = vpack.c.b16 %v629, %v629
      %v634 = vpack.c.b16 %v630, %v630
      %639 = vst.msk [vmem:[%s367] sm:$0xf] %vm618, %v631
      %640 = vst.msk [vmem:[%s367 + $0x4] sm:$0xf] %vm618, %v632
      %641 = vst.msk [vmem:[%s367 + $0x8] sm:$0xf] %vm618, %v633
      %642 = vst.msk [vmem:[%s367 + $0xc] sm:$0xf] %vm618, %v634
      %s643 = smul.u32 4, %s25
      %p644 = scmp.lt.s32.totalorder %s24, 1
      %s645 = scalar_select %p644, %s24, 1
      %p646 = scmp.lt.s32.totalorder %s643, 7
      %s647 = scalar_select %p646, %s643, 7
      %s648 = smul.addr %s645, 8
      %s649 = sadd.s32 %s647, %s648
      %s650 = smul.addr %s649, 4
      %s651 = scalar_lea.vmem %s7, %s650
      %s652 = smul.u32 4, %s25
      %p653 = scmp.lt.s32.totalorder %s24, 1
      %s654 = scalar_select %p653, %s24, 1
      %p655 = scmp.lt.s32.totalorder %s652, 7
      %s656 = scalar_select %p655, %s652, 7
      %s657 = smul.addr %s654, 8
      %s658 = sadd.s32 %s656, %s657
      %s659 = smul.addr %s658, 4
      %s660 = scalar_lea.vmem %s8, %s659
      // Predicated region
      $region49: #{tpu_custom_call.1} parent=47 // pred_check
        %p661 = pneg %p206
      $region50: #{tpu_custom_call.1} parent=47 // pred_check_branch
        %663 = sbr.rel (%p661) target = $region52
      $region51: #{tpu_custom_call.1} parent=47 // pred_region
        %s664 = smul.u32 4, %s25
      $region52: #{tpu_custom_call.1} parent=47 // pred_fallthru
        _
      // Predicated region
      $region53: #{tpu_custom_call.1} parent=47 // pred_check
        %p665 = pneg %p234
      $region54: #{tpu_custom_call.1} parent=47 // pred_check_branch
        %667 = sbr.rel (%p665) target = $region56
      $region55: #{tpu_custom_call.1} parent=47 // pred_region
        %s668 = smul.u32 4, %s25
      $region56: #{tpu_custom_call.1} parent=47 // pred_fallthru
        _
    $region48: #{tpu_custom_call.1} parent=5 // pred_fallthru
      _
    %p669 = scmp.le.s32.totalorder 2, %s15
    // Predicated region
    $region57: #{tpu_custom_call.1} parent=5 // pred_check
      %p670 = pneg %p669
    $region58: #{tpu_custom_call.1} parent=5 // pred_check_branch
      %672 = sbr.rel (%p670) target = $region60
    $region59: #{tpu_custom_call.1} parent=5 // pred_region
      %s673 = ssub.s32 %s15, 2
      // Predicated region
      $region61: #{tpu_custom_call.1} parent=59 // pred_check
        %p674 = pneg %p212
      $region62: #{tpu_custom_call.1} parent=59 // pred_check_branch
        %676 = sbr.rel (%p674) target = $region64
      $region63: #{tpu_custom_call.1} parent=59 // pred_region
        %s677 = smul.u32 4, %s27
        %p678 = scmp.lt.s32.totalorder %s26, 1
        %s679 = scalar_select %p678, %s26, 1
        %p680 = scmp.lt.s32.totalorder %s677, 7
        %s681 = scalar_select %p680, %s677, 7
        %s682 = smul.addr %s679, 8
        %s683 = sadd.s32 %s681, %s682
        %s684 = smul.addr %s683, 4
        %s685 = scalar_lea.vmem %s7, %s684
      $region64: #{tpu_custom_call.1} parent=59 // pred_fallthru
        _
      // Predicated region
      $region65: #{tpu_custom_call.1} parent=59 // pred_check
        %p686 = pneg %p240
      $region66: #{tpu_custom_call.1} parent=59 // pred_check_branch
        %688 = sbr.rel (%p686) target = $region68
      $region67: #{tpu_custom_call.1} parent=59 // pred_region
        %s689 = smul.u32 4, %s27
        %p690 = scmp.lt.s32.totalorder %s26, 1
        %s691 = scalar_select %p690, %s26, 1
        %p692 = scmp.lt.s32.totalorder %s689, 7
        %s693 = scalar_select %p692, %s689, 7
        %s694 = smul.addr %s691, 8
        %s695 = sadd.s32 %s693, %s694
        %s696 = smul.addr %s695, 4
        %s697 = scalar_lea.vmem %s8, %s696
      $region68: #{tpu_custom_call.1} parent=59 // pred_fallthru
        _
    $region60: #{tpu_custom_call.1} parent=5 // pred_fallthru
      _
  $region6: #{tpu_custom_call.1} parent=0 // loop_footer
    %s19 = sadd.s32 1, %s15
  $region7: #{tpu_custom_call.1} parent=0 // loop_footer_branch
    %14 = sbr.rel target = $region3
  $region8: #{tpu_custom_call.1} parent=0 // loop_exit
    _

</llo_original>
